<compile_context>
chip_gen: v7x
topology: tpu7x:2x2x1
jax: 0.10.0
libtpu: 0.0.40
codegen_flags: <defaults>
</compile_context>

<pallas_src>
import jax
import jax.numpy as jnp
from jax.experimental import pallas as pl
from jax.experimental.pallas import tpu as pltpu

NEG_SLOPE = 0.01      # torch.nn.functional.leaky_relu default
LANES = 128           # padded hidden width (one vreg lane row / MXU dim)
FEAT_PAD = 16         # padded input-feature rows shipped to the kernel
N_LAYERS = 4
IN_FEATURES = 12
N_CLASSES = 2
MAX_BLOCK_B = 1024    # 1024-lane f32 activation tile = 512 KiB; tiny even on v7x VMEM


def _leaky_relu(v):
    return jnp.where(v >= 0, v, NEG_SLOPE * v)


def _round_up(x, m):
    return (x + m - 1) // m * m


def _tensorcores_per_chip():
    # Generation hint (v7x = 2 TCs/chip); fully guarded, defaults to 1.
    try:
        info = pltpu.get_tpu_info()
    except Exception:
        return 1
    for attr in ("num_cores", "num_tensorcores", "tensorcores_per_chip", "core_count"):
        v = getattr(info, attr, None)
        if isinstance(v, int) and v > 0:
            return v
    return 1


def _choose_block_b(batch):
    # At 128 lanes the kernel is per-grid-step-overhead bound (~9 ns MXU +
    # ~46 ns DMA vs ~0.35 us fixed per step), so go as wide as the batch allows.
    b_pad = _round_up(max(batch, 1), LANES)
    block_b = min(MAX_BLOCK_B, b_pad)
    # Keep >= num_cores grid steps on multi-TC chips (v7x) so the "parallel"
    # batch axis actually shards across cores; no-op (ncores == 1) on v5e/v6e.
    ncores = _tensorcores_per_chip()
    while ncores > 1 and block_b > LANES and (b_pad + block_b - 1) // block_b < ncores:
        block_b //= 2
    return block_b


def churn_mlp_kernel(x_ref, p_ref, o_ref):
    # x_ref: (16, TB)   transposed input: rows 0:12 = features, rows 12:16 = 0,
    #                   columns = samples (batch on the lane axis).
    # p_ref: (512, 128) four (128, 128) bf16 tiles; tile_l[j, i] = W_l[i, j],
    #                   tile_l[j, 127] = b_l[j], tile_l[127, 127] = 1.0 so the
    #                   "ones" bias row survives every layer (leaky_relu(1)=1).
    # o_ref: (2, TB)    row 0 = P(class 0), row 1 = P(class 1); lane-dense store.
    tb = x_ref.shape[1]
    x = x_ref[...]
    # Build the 128-row activation in-kernel: features, zero pad, ones rows.
    # (8-row block of ones, all sublane-aligned pieces; only row 127 carries the
    #  bias — the matching weight columns 120..126 are zero.)
    h = jnp.concatenate(
        [x,
         jnp.zeros((LANES - FEAT_PAD - 8, tb), jnp.float32),
         jnp.ones((8, tb), jnp.float32)],
        axis=0)                                              # (128, TB) f32
    for l in range(N_LAYERS):
        w = p_ref[l * LANES:(l + 1) * LANES, :]              # static tile view, bf16
        h = _leaky_relu(jnp.dot(w, h.astype(jnp.bfloat16),
                                preferred_element_type=jnp.float32))
    # softmax over 2 classes == sigmoid of the logit difference (no cross-lane
    # reduce); exp and the approx reciprocal both land on the EUP slot.
    z0 = h[0:1, :]
    z1 = h[1:2, :]
    p1 = pl.reciprocal(1.0 + jnp.exp(z0 - z1), approx=True)  # = softmax(...)[:, 1]
    row = jax.lax.broadcasted_iota(jnp.int32, o_ref.shape, 0)
    o_ref[...] = jnp.where(row == 0, 1.0 - p1, p1)           # one dense (2, TB) store


def pack_params(params):
    """Pack the 4 (W, b) pairs, transposed, into one (512, 128) bf16 slab."""
    slab = jnp.zeros((N_LAYERS * LANES, LANES), jnp.float32)
    for l, (w, b) in enumerate(params):
        fin, fout = w.shape
        r0 = l * LANES
        slab = slab.at[r0:r0 + fout, :fin].set(w.T.astype(jnp.float32))
        slab = slab.at[r0:r0 + fout, LANES - 1].set(jnp.reshape(b, (-1,)).astype(jnp.float32))
        slab = slab.at[r0 + LANES - 1, LANES - 1].set(1.0)    # keep the ones-row alive
    return slab.astype(jnp.bfloat16)


@jax.jit
def churn_prediction_forward(x, packed_params):
    """Batched forward: x (B, 12) -> (B, 2) softmax probabilities.
    Per-sample math matches the PyTorch module's batch-of-1 forward."""
    B, F = x.shape
    block_b = _choose_block_b(B)
    B_pad = _round_up(B, block_b)

    # Narrow transposed input slab: ~64 B/sample of HBM traffic instead of 512.
    xt = jnp.zeros((FEAT_PAD, B_pad), jnp.float32)
    xt = xt.at[:F, :B].set(x.T.astype(jnp.float32))

    grid = (B_pad // block_b,)
    flops = 2 * LANES * LANES * B_pad * N_LAYERS
    bytes_accessed = (xt.size * 4
                      + packed_params.size * packed_params.dtype.itemsize
                      + N_CLASSES * B_pad * 4)

    out = pl.pallas_call(
        churn_mlp_kernel,
        out_shape=jax.ShapeDtypeStruct((N_CLASSES, B_pad), jnp.float32),
        grid=grid,
        in_specs=[
            pl.BlockSpec((FEAT_PAD, block_b), lambda i: (0, i)),
            pl.BlockSpec((N_LAYERS * LANES, LANES), lambda i: (0, 0)),
        ],
        out_specs=pl.BlockSpec((N_CLASSES, block_b), lambda i: (0, i)),
        compiler_params=pltpu.CompilerParams(
            dimension_semantics=("parallel",)),
        cost_estimate=pl.CostEstimate(
            flops=flops, transcendentals=2 * B_pad, bytes_accessed=bytes_accessed),
    )(xt, packed_params)
    return out[:, :B].T                                       # (B, 2)


def init_linear(key, fan_in, fan_out):
    # PyTorch-style uniform init with bound 1/sqrt(fan_in).
    kw, kb = jax.random.split(key)
    bound = 1.0 / jnp.sqrt(float(fan_in))
    w = jax.random.uniform(kw, (fan_in, fan_out), jnp.float32, -bound, bound)
    b = jax.random.uniform(kb, (1, fan_out), jnp.float32, -bound, bound)
    return w, b


def ref_forward(x, params):
    # Plain-JAX mirror of the PyTorch forward (applied per row), in f32.
    h = x.astype(jnp.float32)
    for w, b in params:
        h = h @ w + b
        h = jnp.where(h >= 0, h, NEG_SLOPE * h)
    return jax.nn.softmax(h, axis=1)


if __name__ == "__main__":
    shape = (1, 12)        # DataLoader sample shape from the original script
    nbr_classes = 2
    batch = 8              # batched wrapper; batch=1 reproduces the module exactly

    key = jax.random.PRNGKey(0)
    kx, k1, k2, k3, k4 = jax.random.split(key, 5)

    x = jax.random.normal(kx, (batch, shape[0] * shape[1]), jnp.float32)

    d_in = shape[0] * shape[1]       # 12
    d_h1 = shape[0] * 24             # 24
    d_h2 = shape[0] * 48             # 48
    d_h3 = shape[0] * shape[1]       # 12
    d_out = shape[0] * nbr_classes   # 2

    params = [
        init_linear(k1, d_in, d_h1),
        init_linear(k2, d_h1, d_h2),
        init_linear(k3, d_h2, d_h3),
        init_linear(k4, d_h3, d_out),
    ]

    packed = pack_params(params)     # one-time packing of all weights + biases (bf16)
    probs = churn_prediction_forward(x, packed)
    jax.block_until_ready(probs)

    ref = ref_forward(x, params)
    assert probs.shape == (batch, nbr_classes)
    assert jnp.allclose(jnp.sum(probs, axis=1), 1.0, atol=1e-5)
    # bf16 MXU operands + approx reciprocal -> looser tolerance than pure f32.
    assert jnp.allclose(probs, ref, atol=1.5e-2, rtol=1e-2), (probs, ref)
    print("KERNEL_OK")
</pallas_src>

<mosaic_0001>
module attributes {stable_mosaic.version = 11 : i64} {
  func.func @churn_mlp_kernel(%arg0: i32, %arg1: memref<16x128xf32, #tpu.memory_space<vmem>>, %arg2: memref<512x128xbf16, #tpu.memory_space<vmem>>, %arg3: memref<2x128xf32, #tpu.memory_space<vmem>>) attributes {dimension_semantics = [#tpu.dimension_semantics<parallel>], iteration_bounds = array<i64: 1>, scalar_prefetch = 0 : i64, scratch_operands = 0 : i64, tpu.core_type = #tpu.core_type<tc>, window_params = [{transform_indices = @transform_0, window_bounds = array<i64: 16, 128>}, {pipeline_mode = #tpu.pipeline_mode<synchronous>, transform_indices = @transform_1, window_bounds = array<i64: 512, 128>}, {transform_indices = @transform_2, window_bounds = array<i64: 2, 128>}]} {
    %c0 = arith.constant 0 : index
    %c0_0 = arith.constant 0 : index
    %0 = vector.load %arg1[%c0, %c0_0] : memref<16x128xf32, #tpu.memory_space<vmem>>, vector<16x128xf32>
    %cst = arith.constant 0.000000e+00 : f32
    %1 = vector.broadcast %cst : f32 to vector<104x128xf32>
    %cst_1 = arith.constant 1.000000e+00 : f32
    %2 = vector.broadcast %cst_1 : f32 to vector<8x128xf32>
    %3 = tpu.concatenate %0, %1, %2 in 0 : vector<16x128xf32>, vector<104x128xf32>, vector<8x128xf32> -> vector<128x128xf32>
    %c0_2 = arith.constant 0 : index
    %c0_3 = arith.constant 0 : index
    %4 = vector.load %arg2[%c0_2, %c0_3] : memref<512x128xbf16, #tpu.memory_space<vmem>>, vector<128x128xbf16>
    %5 = arith.truncf %3 : vector<128x128xf32> to vector<128x128xbf16>
    %cst_4 = arith.constant dense<0.000000e+00> : vector<128x128xf32>
    %6 = tpu.matmul %4, %5, %cst_4 {dimension_numbers = #tpu.dot_dimension_numbers<[1], [0], [0], [1], [0, 0, 1, 1], [], []>} : vector<128x128xbf16>, vector<128x128xbf16>, vector<128x128xf32> -> vector<128x128xf32>
    %cst_5 = arith.constant 0.000000e+00 : f32
    %7 = vector.broadcast %cst_5 : f32 to vector<128x128xf32>
    %8 = arith.cmpf oge, %6, %7 : vector<128x128xf32>
    %cst_6 = arith.constant 0.00999999977 : f32
    %9 = vector.broadcast %cst_6 : f32 to vector<128x128xf32>
    %10 = arith.mulf %9, %6 : vector<128x128xf32>
    %11 = arith.select %8, %6, %10 : vector<128x128xi1>, vector<128x128xf32>
    %c128 = arith.constant 128 : index
    %c0_7 = arith.constant 0 : index
    %12 = vector.load %arg2[%c128, %c0_7] : memref<512x128xbf16, #tpu.memory_space<vmem>>, vector<128x128xbf16>
    %13 = arith.truncf %11 : vector<128x128xf32> to vector<128x128xbf16>
    %cst_8 = arith.constant dense<0.000000e+00> : vector<128x128xf32>
    %14 = tpu.matmul %12, %13, %cst_8 {dimension_numbers = #tpu.dot_dimension_numbers<[1], [0], [0], [1], [0, 0, 1, 1], [], []>} : vector<128x128xbf16>, vector<128x128xbf16>, vector<128x128xf32> -> vector<128x128xf32>
    %cst_9 = arith.constant 0.000000e+00 : f32
    %15 = vector.broadcast %cst_9 : f32 to vector<128x128xf32>
    %16 = arith.cmpf oge, %14, %15 : vector<128x128xf32>
    %cst_10 = arith.constant 0.00999999977 : f32
    %17 = vector.broadcast %cst_10 : f32 to vector<128x128xf32>
    %18 = arith.mulf %17, %14 : vector<128x128xf32>
    %19 = arith.select %16, %14, %18 : vector<128x128xi1>, vector<128x128xf32>
    %c256 = arith.constant 256 : index
    %c0_11 = arith.constant 0 : index
    %20 = vector.load %arg2[%c256, %c0_11] : memref<512x128xbf16, #tpu.memory_space<vmem>>, vector<128x128xbf16>
    %21 = arith.truncf %19 : vector<128x128xf32> to vector<128x128xbf16>
    %cst_12 = arith.constant dense<0.000000e+00> : vector<128x128xf32>
    %22 = tpu.matmul %20, %21, %cst_12 {dimension_numbers = #tpu.dot_dimension_numbers<[1], [0], [0], [1], [0, 0, 1, 1], [], []>} : vector<128x128xbf16>, vector<128x128xbf16>, vector<128x128xf32> -> vector<128x128xf32>
    %cst_13 = arith.constant 0.000000e+00 : f32
    %23 = vector.broadcast %cst_13 : f32 to vector<128x128xf32>
    %24 = arith.cmpf oge, %22, %23 : vector<128x128xf32>
    %cst_14 = arith.constant 0.00999999977 : f32
    %25 = vector.broadcast %cst_14 : f32 to vector<128x128xf32>
    %26 = arith.mulf %25, %22 : vector<128x128xf32>
    %27 = arith.select %24, %22, %26 : vector<128x128xi1>, vector<128x128xf32>
    %c384 = arith.constant 384 : index
    %c0_15 = arith.constant 0 : index
    %28 = vector.load %arg2[%c384, %c0_15] : memref<512x128xbf16, #tpu.memory_space<vmem>>, vector<128x128xbf16>
    %29 = arith.truncf %27 : vector<128x128xf32> to vector<128x128xbf16>
    %cst_16 = arith.constant dense<0.000000e+00> : vector<128x128xf32>
    %30 = tpu.matmul %28, %29, %cst_16 {dimension_numbers = #tpu.dot_dimension_numbers<[1], [0], [0], [1], [0, 0, 1, 1], [], []>} : vector<128x128xbf16>, vector<128x128xbf16>, vector<128x128xf32> -> vector<128x128xf32>
    %cst_17 = arith.constant 0.000000e+00 : f32
    %31 = vector.broadcast %cst_17 : f32 to vector<128x128xf32>
    %32 = arith.cmpf oge, %30, %31 : vector<128x128xf32>
    %cst_18 = arith.constant 0.00999999977 : f32
    %33 = vector.broadcast %cst_18 : f32 to vector<128x128xf32>
    %34 = arith.mulf %33, %30 : vector<128x128xf32>
    %35 = arith.select %32, %30, %34 : vector<128x128xi1>, vector<128x128xf32>
    %36 = vector.extract_strided_slice %35 {offsets = [0, 0], sizes = [1, 128], strides = [1, 1]} : vector<128x128xf32> to vector<1x128xf32>
    %37 = vector.extract_strided_slice %35 {offsets = [1, 0], sizes = [1, 128], strides = [1, 1]} : vector<128x128xf32> to vector<1x128xf32>
    %38 = arith.subf %36, %37 : vector<1x128xf32>
    %39 = math.exp %38 : vector<1x128xf32>
    %cst_19 = arith.constant 1.000000e+00 : f32
    %40 = vector.broadcast %cst_19 : f32 to vector<1x128xf32>
    %41 = arith.addf %40, %39 : vector<1x128xf32>
    %42 = tpu.reciprocal %41 {approx = true} : vector<1x128xf32> -> vector<1x128xf32>
    %43 = tpu.iota {dimensions = array<i32: 0>} : vector<2x128xi32>
    %c0_i32 = arith.constant 0 : i32
    %44 = vector.broadcast %c0_i32 : i32 to vector<2x128xi32>
    %45 = arith.cmpi eq, %43, %44 : vector<2x128xi32>
    %cst_20 = arith.constant 1.000000e+00 : f32
    %46 = vector.broadcast %cst_20 : f32 to vector<1x128xf32>
    %47 = arith.subf %46, %42 : vector<1x128xf32>
    %48 = vector.shape_cast %47 : vector<1x128xf32> to vector<1x128xf32>
    %49 = vector.broadcast %48 : vector<1x128xf32> to vector<2x128xf32>
    %50 = vector.shape_cast %42 : vector<1x128xf32> to vector<1x128xf32>
    %51 = vector.broadcast %50 : vector<1x128xf32> to vector<2x128xf32>
    %52 = arith.select %45, %49, %51 : vector<2x128xi1>, vector<2x128xf32>
    %c0_21 = arith.constant 0 : index
    %c0_22 = arith.constant 0 : index
    %53 = vector.load %arg3[%c0_21, %c0_22] : memref<2x128xf32, #tpu.memory_space<vmem>>, vector<2x128xf32>
    tpu.vector_store %arg3[%c0_21, %c0_22], %52 {strides = array<i32>} : memref<2x128xf32, #tpu.memory_space<vmem>>, vector<2x128xf32>,
    return
  }
  func.func @transform_0(%arg0: i32) -> (i32, i32) {
    %c0_i32 = arith.constant 0 : i32
    %c0_i32_0 = arith.constant 0 : i32
    return %c0_i32, %arg0 : i32, i32
  }
  func.func @transform_1(%arg0: i32) -> (i32, i32) {
    %c0_i32 = arith.constant 0 : i32
    %c0_i32_0 = arith.constant 0 : i32
    %c0_i32_1 = arith.constant 0 : i32
    return %c0_i32, %c0_i32_0 : i32, i32
  }
  func.func @transform_2(%arg0: i32) -> (i32, i32) {
    %c0_i32 = arith.constant 0 : i32
    %c0_i32_0 = arith.constant 0 : i32
    return %c0_i32, %arg0 : i32, i32
  }
}

</mosaic_0001>

<llo_original>
// kernel: churn_prediction_forward.1
$region0: #{churn_prediction_forward.1}
  #allocation0 [shape = 'u32[]', space=smem, size = 0x4, offset = 0x4, fixed_abs, tag = 'smem constant byte address 0x4 - core index']
  #allocation1 [shape = 'u32[144,128]{1,0:T(1,128)}', space=vmem, size = 0x12000, scoped, tag = 'internal scratch']
  %s0 = inlined_call_operand.vmem [shape: f32[16,128], index: 0, kind: input, shape index: {}]
  %s1 = inlined_call_operand.hbm [shape: bf16[512,128], index: 1, kind: input, shape index: {}]
  %s2 = inlined_call_operand.vmem [shape: f32[2,128], index: 2, kind: output, shape index: {}]
  %s3 = sld [smem:[#allocation0]]
  $region22: #{churn_prediction_forward.1} parent=0
    _
  %s5 = ssub.s32 1, %s3
  %s6 = scalar_select 0, %s5, %s3
  $region1: #{churn_prediction_forward.1} parent=0
    #allocation2 [shape = 'u8[131072]{0}', space=vmem, size = 0x20000, scoped, tag = 'input window, operand 1, single buffered']
    #allocation3 [shape = 's32[1]{0}', space=sflag, size = 0x4, scoped, tag = 'scoped memory for churn_prediction_forward.1']
    %7 = vsyncpa [#allocation3], 0
    // Predicated region
    $region2: #{churn_prediction_forward.1} parent=1 // pred_check
      _
    $region3: #{churn_prediction_forward.1} parent=1 // pred_check_branch
      %9 = sbr.rel (0) target = $region5
    $region4: #{churn_prediction_forward.1} parent=1 // pred_region
      _
    $region5: #{churn_prediction_forward.1} parent=1 // pred_fallthru
      _
    // Predicated region
    $region6: #{churn_prediction_forward.1} parent=1 // pred_check
      _
    $region7: #{churn_prediction_forward.1} parent=1 // pred_check_branch
      %11 = sbr.rel (0) target = $region9
    $region8: #{churn_prediction_forward.1} parent=1 // pred_region
      %s13 = ssub.s32 4096, 4096
      %14 = vsyncadd [#allocation3], %s13
      %s15 = sshll.u32 [#allocation2], 4
      %s16 = int_to_ptr.vmem [resolvable:$true] %s15
      %21 = dma.hbm_to_vmem [thread:$0]  %s1, 4096, %s16, [#allocation3], 64, 64, 4
    $region9: #{churn_prediction_forward.1} parent=1 // pred_fallthru
      _
    // Predicated region
    $region10: #{churn_prediction_forward.1} parent=1 // pred_check
      _
    $region11: #{churn_prediction_forward.1} parent=1 // pred_check_branch
      %23 = sbr.rel (0) target = $region13
    $region12: #{churn_prediction_forward.1} parent=1 // pred_region
      %24 = dma.done [#allocation3], 4096
    $region13: #{churn_prediction_forward.1} parent=1 // pred_fallthru
      _
    %v26 = vld [vmem:[%s0] sm:$0xff]
    %v27 = vld [vmem:[%s0 + $0x8] sm:$0xff]
    %v28 = vld [vmem:[#allocation2] sm:$0xf]
    %v29 = vld [vmem:[#allocation2 + $0x4] sm:$0xf]
    %v30 = vld [vmem:[#allocation2 + $0x8] sm:$0xf]
    %v31 = vld [vmem:[#allocation2 + $0xc] sm:$0xf]
    %v32 = vld [vmem:[#allocation2 + $0x10] sm:$0xf]
    %v33 = vld [vmem:[#allocation2 + $0x14] sm:$0xf]
    %v34 = vld [vmem:[#allocation2 + $0x18] sm:$0xf]
    %v35 = vld [vmem:[#allocation2 + $0x1c] sm:$0xf]
    %v36 = vld [vmem:[#allocation2 + $0x20] sm:$0xf]
    %v37 = vld [vmem:[#allocation2 + $0x24] sm:$0xf]
    %v38 = vld [vmem:[#allocation2 + $0x28] sm:$0xf]
    %v39 = vld [vmem:[#allocation2 + $0x2c] sm:$0xf]
    %v40 = vld [vmem:[#allocation2 + $0x30] sm:$0xf]
    %v41 = vld [vmem:[#allocation2 + $0x34] sm:$0xf]
    %v42 = vld [vmem:[#allocation2 + $0x38] sm:$0xf]
    %v43 = vld [vmem:[#allocation2 + $0x3c] sm:$0xf]
    %v44 = vpack.c.bf16 %v27, %v26
    %v45 = vpack.c.bf16 0.0, 0.0
    %v46 = vpack.c.bf16 1.0, 0.0
    %v63 = vunpack.c.l.b16 %v28
    %v64 = vunpack.c.l.b16 %v29
    %v65 = vunpack.c.l.b16 %v30
    %v66 = vunpack.c.l.b16 %v31
    %v67 = vunpack.c.l.b16 %v32
    %v68 = vunpack.c.l.b16 %v33
    %v69 = vunpack.c.l.b16 %v34
    %v70 = vunpack.c.l.b16 %v35
    %v71 = vunpack.c.l.b16 %v36
    %v72 = vunpack.c.l.b16 %v37
    %v73 = vunpack.c.l.b16 %v38
    %v74 = vunpack.c.l.b16 %v39
    %v75 = vunpack.c.l.b16 %v40
    %v76 = vunpack.c.l.b16 %v41
    %v77 = vunpack.c.l.b16 %v42
    %v78 = vunpack.c.l.b16 %v43
    %v79 = vpack.c.b16 %v64, %v63
    %v80 = vpack.c.b16 %v66, %v65
    %v81 = vpack.c.b16 %v68, %v67
    %v82 = vpack.c.b16 %v70, %v69
    %v83 = vpack.c.b16 %v72, %v71
    %v84 = vpack.c.b16 %v74, %v73
    %v85 = vpack.c.b16 %v76, %v75
    %v86 = vpack.c.b16 %v78, %v77
    %95 = vmatprep.subr.bf16.mxu0 0
    %96 = vmatpush1.bf16.msra.mxu0 %v44
    %97 = vmatprep.subr.bf16.mxu0 0
    %98 = vmatpush1.bf16.msra.mxu0 %v45
    %99 = vmatprep.subr.bf16.mxu0 0
    %100 = vmatpush1.bf16.msra.mxu0 %v45
    %101 = vmatprep.subr.bf16.mxu0 0
    %102 = vmatpush1.bf16.msra.mxu0 %v45
    %103 = vmatprep.subr.bf16.mxu0 0
    %104 = vmatpush1.bf16.msra.mxu0 %v45
    %105 = vmatprep.subr.bf16.mxu0 0
    %106 = vmatpush1.bf16.msra.mxu0 %v45
    %107 = vmatprep.subr.bf16.mxu0 0
    %108 = vmatpush1.bf16.msra.mxu0 %v45
    %109 = vmatprep.subr.bf16.mxu0 0
    %110 = vmatpush1.bf16.msra.mxu0 %v46
    %111 = vmatprep.subr.bf16.mxu0 0
    %112 = vmatpush1.bf16.msra.mxu0 0
    %113 = vmatprep.subr.bf16.mxu0 0
    %114 = vmatpush1.bf16.msra.mxu0 0
    %115 = vmatprep.subr.bf16.mxu0 0
    %116 = vmatpush1.bf16.msra.mxu0 0
    %117 = vmatprep.subr.bf16.mxu0 0
    %118 = vmatpush1.bf16.msra.mxu0 0
    %119 = vmatprep.subr.bf16.mxu0 0
    %120 = vmatpush1.bf16.msra.mxu0 0
    %121 = vmatprep.subr.bf16.mxu0 0
    %122 = vmatpush1.bf16.msra.mxu0 0
    %123 = vmatprep.subr.bf16.mxu0 0
    %124 = vmatpush1.bf16.msra.mxu0 0
    %125 = vmatprep.subr.bf16.mxu0 0
    %126 = vmatpush1.bf16.msra.mxu0 0
    %127 = vmatprep.mubr.bf16.mxu0 0
    %128 = vmatmul.mubr.bf16.gmra.mrb[0].mxu0 %v79
    %v129 = vpop.f32.mrb[0].mxu0
    %v130 = vadd.f32 0.0, %v129
    %v131 = vpop.f32.mrb[0].mxu0
    %v132 = vpop.f32.mrb[0].mxu0
    %v133 = vadd.f32 0.0, %v132
    %v134 = vpop.f32.mrb[0].mxu0
    %135 = vmatprep.mubr.bf16.mxu0 0
    %136 = vmatmul.mubr.bf16.gmra.mrb[0].mxu0 %v80
    %v137 = vpop.f32.mrb[0].mxu0
    %v138 = vadd.f32 0.0, %v137
    %v139 = vpop.f32.mrb[0].mxu0
    %v140 = vpop.f32.mrb[0].mxu0
    %v141 = vadd.f32 0.0, %v140
    %v142 = vpop.f32.mrb[0].mxu0
    %143 = vmatprep.mubr.bf16.mxu0 0
    %144 = vmatmul.mubr.bf16.gmra.mrb[0].mxu0 %v81
    %v145 = vpop.f32.mrb[0].mxu0
    %v146 = vadd.f32 0.0, %v145
    %v147 = vpop.f32.mrb[0].mxu0
    %v148 = vpop.f32.mrb[0].mxu0
    %v149 = vadd.f32 0.0, %v148
    %v150 = vpop.f32.mrb[0].mxu0
    %151 = vmatprep.mubr.bf16.mxu0 0
    %152 = vmatmul.mubr.bf16.gmra.mrb[0].mxu0 %v82
    %v153 = vpop.f32.mrb[0].mxu0
    %v154 = vadd.f32 0.0, %v153
    %v155 = vpop.f32.mrb[0].mxu0
    %v156 = vpop.f32.mrb[0].mxu0
    %v157 = vadd.f32 0.0, %v156
    %v158 = vpop.f32.mrb[0].mxu0
    %159 = vmatprep.mubr.bf16.mxu0 0
    %160 = vmatmul.mubr.bf16.gmra.mrb[0].mxu0 %v83
    %v161 = vpop.f32.mrb[0].mxu0
    %v162 = vadd.f32 0.0, %v161
    %v163 = vpop.f32.mrb[0].mxu0
    %v164 = vpop.f32.mrb[0].mxu0
    %v165 = vadd.f32 0.0, %v164
    %v166 = vpop.f32.mrb[0].mxu0
    %167 = vmatprep.mubr.bf16.mxu0 0
    %168 = vmatmul.mubr.bf16.gmra.mrb[0].mxu0 %v84
    %v169 = vpop.f32.mrb[0].mxu0
    %v170 = vadd.f32 0.0, %v169
    %v171 = vpop.f32.mrb[0].mxu0
    %v172 = vpop.f32.mrb[0].mxu0
    %v173 = vadd.f32 0.0, %v172
    %v174 = vpop.f32.mrb[0].mxu0
    %175 = vmatprep.mubr.bf16.mxu0 0
    %176 = vmatmul.mubr.bf16.gmra.mrb[0].mxu0 %v85
    %v177 = vpop.f32.mrb[0].mxu0
    %v178 = vadd.f32 0.0, %v177
    %v179 = vpop.f32.mrb[0].mxu0
    %v180 = vpop.f32.mrb[0].mxu0
    %v181 = vadd.f32 0.0, %v180
    %v182 = vpop.f32.mrb[0].mxu0
    %183 = vmatprep.mubr.bf16.mxu0 0
    %184 = vmatmul.mubr.bf16.gmra.mrb[0].mxu0 %v86
    %v185 = vpop.f32.mrb[0].mxu0
    %v186 = vadd.f32 0.0, %v185
    %v187 = vpop.f32.mrb[0].mxu0
    %v188 = vpop.f32.mrb[0].mxu0
    %v189 = vadd.f32 0.0, %v188
    %v190 = vpop.f32.mrb[0].mxu0
    %191 = vdwg.mxu0
    %vm192 = vcmp.ge.f32.partialorder %v130, 0.0
    %vm193 = vcmp.ge.f32.partialorder %v133, 0.0
    %vm194 = vcmp.ge.f32.partialorder %v138, 0.0
    %vm195 = vcmp.ge.f32.partialorder %v141, 0.0
    %vm196 = vcmp.ge.f32.partialorder %v146, 0.0
    %vm197 = vcmp.ge.f32.partialorder %v149, 0.0
    %vm198 = vcmp.ge.f32.partialorder %v154, 0.0
    %vm199 = vcmp.ge.f32.partialorder %v157, 0.0
    %vm200 = vcmp.ge.f32.partialorder %v162, 0.0
    %vm201 = vcmp.ge.f32.partialorder %v165, 0.0
    %vm202 = vcmp.ge.f32.partialorder %v170, 0.0
    %vm203 = vcmp.ge.f32.partialorder %v173, 0.0
    %vm204 = vcmp.ge.f32.partialorder %v178, 0.0
    %vm205 = vcmp.ge.f32.partialorder %v181, 0.0
    %vm206 = vcmp.ge.f32.partialorder %v186, 0.0
    %vm207 = vcmp.ge.f32.partialorder %v189, 0.0
    %v208 = vmul.f32 %v130, 0.01
    %v209 = vmul.f32 %v133, 0.01
    %v210 = vmul.f32 %v138, 0.01
    %v211 = vmul.f32 %v141, 0.01
    %v212 = vmul.f32 %v146, 0.01
    %v213 = vmul.f32 %v149, 0.01
    %v214 = vmul.f32 %v154, 0.01
    %v215 = vmul.f32 %v157, 0.01
    %v216 = vmul.f32 %v162, 0.01
    %v217 = vmul.f32 %v165, 0.01
    %v218 = vmul.f32 %v170, 0.01
    %v219 = vmul.f32 %v173, 0.01
    %v220 = vmul.f32 %v178, 0.01
    %v221 = vmul.f32 %v181, 0.01
    %v222 = vmul.f32 %v186, 0.01
    %v223 = vmul.f32 %v189, 0.01
    %v224 = vsel %vm192, %v130, %v208
    %v225 = vsel %vm193, %v133, %v209
    %v226 = vsel %vm194, %v138, %v210
    %v227 = vsel %vm195, %v141, %v211
    %v228 = vsel %vm196, %v146, %v212
    %v229 = vsel %vm197, %v149, %v213
    %v230 = vsel %vm198, %v154, %v214
    %v231 = vsel %vm199, %v157, %v215
    %v232 = vsel %vm200, %v162, %v216
    %v233 = vsel %vm201, %v165, %v217
    %v234 = vsel %vm202, %v170, %v218
    %v235 = vsel %vm203, %v173, %v219
    %v236 = vsel %vm204, %v178, %v220
    %v237 = vsel %vm205, %v181, %v221
    %v238 = vsel %vm206, %v186, %v222
    %v239 = vsel %vm207, %v189, %v223
    %v240 = vld [vmem:[#allocation2 + $0x40] sm:$0xf]
    %v241 = vld [vmem:[#allocation2 + $0x44] sm:$0xf]
    %v242 = vld [vmem:[#allocation2 + $0x48] sm:$0xf]
    %v243 = vld [vmem:[#allocation2 + $0x4c] sm:$0xf]
    %v244 = vld [vmem:[#allocation2 + $0x50] sm:$0xf]
    %v245 = vld [vmem:[#allocation2 + $0x54] sm:$0xf]
    %v246 = vld [vmem:[#allocation2 + $0x58] sm:$0xf]
    %v247 = vld [vmem:[#allocation2 + $0x5c] sm:$0xf]
    %v248 = vld [vmem:[#allocation2 + $0x60] sm:$0xf]
    %v249 = vld [vmem:[#allocation2 + $0x64] sm:$0xf]
    %v250 = vld [vmem:[#allocation2 + $0x68] sm:$0xf]
    %v251 = vld [vmem:[#allocation2 + $0x6c] sm:$0xf]
    %v252 = vld [vmem:[#allocation2 + $0x70] sm:$0xf]
    %v253 = vld [vmem:[#allocation2 + $0x74] sm:$0xf]
    %v254 = vld [vmem:[#allocation2 + $0x78] sm:$0xf]
    %v255 = vld [vmem:[#allocation2 + $0x7c] sm:$0xf]
    %v256 = vpack.c.bf16 %v225, %v224
    %v257 = vpack.c.bf16 %v227, %v226
    %v258 = vpack.c.bf16 %v229, %v228
    %v259 = vpack.c.bf16 %v231, %v230
    %v260 = vpack.c.bf16 %v233, %v232
    %v261 = vpack.c.bf16 %v235, %v234
    %v262 = vpack.c.bf16 %v237, %v236
    %v263 = vpack.c.bf16 %v239, %v238
    %v280 = vunpack.c.l.b16 %v240
    %v281 = vunpack.c.l.b16 %v241
    %v282 = vunpack.c.l.b16 %v242
    %v283 = vunpack.c.l.b16 %v243
    %v284 = vunpack.c.l.b16 %v244
    %v285 = vunpack.c.l.b16 %v245
    %v286 = vunpack.c.l.b16 %v246
    %v287 = vunpack.c.l.b16 %v247
    %v288 = vunpack.c.l.b16 %v248
    %v289 = vunpack.c.l.b16 %v249
    %v290 = vunpack.c.l.b16 %v250
    %v291 = vunpack.c.l.b16 %v251
    %v292 = vunpack.c.l.b16 %v252
    %v293 = vunpack.c.l.b16 %v253
    %v294 = vunpack.c.l.b16 %v254
    %v295 = vunpack.c.l.b16 %v255
    %v296 = vpack.c.b16 %v281, %v280
    %v297 = vpack.c.b16 %v283, %v282
    %v298 = vpack.c.b16 %v285, %v284
    %v299 = vpack.c.b16 %v287, %v286
    %v300 = vpack.c.b16 %v289, %v288
    %v301 = vpack.c.b16 %v291, %v290
    %v302 = vpack.c.b16 %v293, %v292
    %v303 = vpack.c.b16 %v295, %v294
    %312 = vmatprep.subr.bf16.mxu0 0
    %313 = vmatpush1.bf16.msra.mxu0 %v256
    %314 = vmatprep.subr.bf16.mxu0 0
    %315 = vmatpush1.bf16.msra.mxu0 %v257
    %316 = vmatprep.subr.bf16.mxu0 0
    %317 = vmatpush1.bf16.msra.mxu0 %v258
    %318 = vmatprep.subr.bf16.mxu0 0
    %319 = vmatpush1.bf16.msra.mxu0 %v259
    %320 = vmatprep.subr.bf16.mxu0 0
    %321 = vmatpush1.bf16.msra.mxu0 %v260
    %322 = vmatprep.subr.bf16.mxu0 0
    %323 = vmatpush1.bf16.msra.mxu0 %v261
    %324 = vmatprep.subr.bf16.mxu0 0
    %325 = vmatpush1.bf16.msra.mxu0 %v262
    %326 = vmatprep.subr.bf16.mxu0 0
    %327 = vmatpush1.bf16.msra.mxu0 %v263
    %328 = vmatprep.subr.bf16.mxu0 0
    %329 = vmatpush1.bf16.msra.mxu0 0
    %330 = vmatprep.subr.bf16.mxu0 0
    %331 = vmatpush1.bf16.msra.mxu0 0
    %332 = vmatprep.subr.bf16.mxu0 0
    %333 = vmatpush1.bf16.msra.mxu0 0
    %334 = vmatprep.subr.bf16.mxu0 0
    %335 = vmatpush1.bf16.msra.mxu0 0
    %336 = vmatprep.subr.bf16.mxu0 0
    %337 = vmatpush1.bf16.msra.mxu0 0
    %338 = vmatprep.subr.bf16.mxu0 0
    %339 = vmatpush1.bf16.msra.mxu0 0
    %340 = vmatprep.subr.bf16.mxu0 0
    %341 = vmatpush1.bf16.msra.mxu0 0
    %342 = vmatprep.subr.bf16.mxu0 0
    %343 = vmatpush1.bf16.msra.mxu0 0
    %344 = vmatprep.mubr.bf16.mxu0 0
    %345 = vmatmul.mubr.bf16.gmra.mrb[0].mxu0 %v296
    %v346 = vpop.f32.mrb[0].mxu0
    %v347 = vadd.f32 0.0, %v346
    %v348 = vpop.f32.mrb[0].mxu0
    %v349 = vpop.f32.mrb[0].mxu0
    %v350 = vadd.f32 0.0, %v349
    %v351 = vpop.f32.mrb[0].mxu0
    %352 = vmatprep.mubr.bf16.mxu0 0
    %353 = vmatmul.mubr.bf16.gmra.mrb[0].mxu0 %v297
    %v354 = vpop.f32.mrb[0].mxu0
    %v355 = vadd.f32 0.0, %v354
    %v356 = vpop.f32.mrb[0].mxu0
    %v357 = vpop.f32.mrb[0].mxu0
    %v358 = vadd.f32 0.0, %v357
    %v359 = vpop.f32.mrb[0].mxu0
    %360 = vmatprep.mubr.bf16.mxu0 0
    %361 = vmatmul.mubr.bf16.gmra.mrb[0].mxu0 %v298
    %v362 = vpop.f32.mrb[0].mxu0
    %v363 = vadd.f32 0.0, %v362
    %v364 = vpop.f32.mrb[0].mxu0
    %v365 = vpop.f32.mrb[0].mxu0
    %v366 = vadd.f32 0.0, %v365
    %v367 = vpop.f32.mrb[0].mxu0
    %368 = vmatprep.mubr.bf16.mxu0 0
    %369 = vmatmul.mubr.bf16.gmra.mrb[0].mxu0 %v299
    %v370 = vpop.f32.mrb[0].mxu0
    %v371 = vadd.f32 0.0, %v370
    %v372 = vpop.f32.mrb[0].mxu0
    %v373 = vpop.f32.mrb[0].mxu0
    %v374 = vadd.f32 0.0, %v373
    %v375 = vpop.f32.mrb[0].mxu0
    %376 = vmatprep.mubr.bf16.mxu0 0
    %377 = vmatmul.mubr.bf16.gmra.mrb[0].mxu0 %v300
    %v378 = vpop.f32.mrb[0].mxu0
    %v379 = vadd.f32 0.0, %v378
    %v380 = vpop.f32.mrb[0].mxu0
    %v381 = vpop.f32.mrb[0].mxu0
    %v382 = vadd.f32 0.0, %v381
    %v383 = vpop.f32.mrb[0].mxu0
    %384 = vmatprep.mubr.bf16.mxu0 0
    %385 = vmatmul.mubr.bf16.gmra.mrb[0].mxu0 %v301
    %v386 = vpop.f32.mrb[0].mxu0
    %v387 = vadd.f32 0.0, %v386
    %v388 = vpop.f32.mrb[0].mxu0
    %v389 = vpop.f32.mrb[0].mxu0
    %v390 = vadd.f32 0.0, %v389
    %v391 = vpop.f32.mrb[0].mxu0
    %392 = vmatprep.mubr.bf16.mxu0 0
    %393 = vmatmul.mubr.bf16.gmra.mrb[0].mxu0 %v302
    %v394 = vpop.f32.mrb[0].mxu0
    %v395 = vadd.f32 0.0, %v394
    %v396 = vpop.f32.mrb[0].mxu0
    %v397 = vpop.f32.mrb[0].mxu0
    %v398 = vadd.f32 0.0, %v397
    %v399 = vpop.f32.mrb[0].mxu0
    %400 = vmatprep.mubr.bf16.mxu0 0
    %401 = vmatmul.mubr.bf16.gmra.mrb[0].mxu0 %v303
    %v402 = vpop.f32.mrb[0].mxu0
    %v403 = vadd.f32 0.0, %v402
    %v404 = vpop.f32.mrb[0].mxu0
    %v405 = vpop.f32.mrb[0].mxu0
    %v406 = vadd.f32 0.0, %v405
    %v407 = vpop.f32.mrb[0].mxu0
    %408 = vdwg.mxu0
    %vm409 = vcmp.ge.f32.partialorder %v347, 0.0
    %vm410 = vcmp.ge.f32.partialorder %v350, 0.0
    %vm411 = vcmp.ge.f32.partialorder %v355, 0.0
    %vm412 = vcmp.ge.f32.partialorder %v358, 0.0
    %vm413 = vcmp.ge.f32.partialorder %v363, 0.0
    %vm414 = vcmp.ge.f32.partialorder %v366, 0.0
    %vm415 = vcmp.ge.f32.partialorder %v371, 0.0
    %vm416 = vcmp.ge.f32.partialorder %v374, 0.0
    %vm417 = vcmp.ge.f32.partialorder %v379, 0.0
    %vm418 = vcmp.ge.f32.partialorder %v382, 0.0
    %vm419 = vcmp.ge.f32.partialorder %v387, 0.0
    %vm420 = vcmp.ge.f32.partialorder %v390, 0.0
    %vm421 = vcmp.ge.f32.partialorder %v395, 0.0
    %vm422 = vcmp.ge.f32.partialorder %v398, 0.0
    %vm423 = vcmp.ge.f32.partialorder %v403, 0.0
    %vm424 = vcmp.ge.f32.partialorder %v406, 0.0
    %v425 = vmul.f32 %v347, 0.01
    %v426 = vmul.f32 %v350, 0.01
    %v427 = vmul.f32 %v355, 0.01
    %v428 = vmul.f32 %v358, 0.01
    %v429 = vmul.f32 %v363, 0.01
    %v430 = vmul.f32 %v366, 0.01
    %v431 = vmul.f32 %v371, 0.01
    %v432 = vmul.f32 %v374, 0.01
    %v433 = vmul.f32 %v379, 0.01
    %v434 = vmul.f32 %v382, 0.01
    %v435 = vmul.f32 %v387, 0.01
    %v436 = vmul.f32 %v390, 0.01
    %v437 = vmul.f32 %v395, 0.01
    %v438 = vmul.f32 %v398, 0.01
    %v439 = vmul.f32 %v403, 0.01
    %v440 = vmul.f32 %v406, 0.01
    %v441 = vsel %vm409, %v347, %v425
    %v442 = vsel %vm410, %v350, %v426
    %v443 = vsel %vm411, %v355, %v427
    %v444 = vsel %vm412, %v358, %v428
    %v445 = vsel %vm413, %v363, %v429
    %v446 = vsel %vm414, %v366, %v430
    %v447 = vsel %vm415, %v371, %v431
    %v448 = vsel %vm416, %v374, %v432
    %v449 = vsel %vm417, %v379, %v433
    %v450 = vsel %vm418, %v382, %v434
    %v451 = vsel %vm419, %v387, %v435
    %v452 = vsel %vm420, %v390, %v436
    %v453 = vsel %vm421, %v395, %v437
    %v454 = vsel %vm422, %v398, %v438
    %v455 = vsel %vm423, %v403, %v439
    %v456 = vsel %vm424, %v406, %v440
    %v457 = vld [vmem:[#allocation2 + $0x80] sm:$0xf]
    %v458 = vld [vmem:[#allocation2 + $0x84] sm:$0xf]
    %v459 = vld [vmem:[#allocation2 + $0x88] sm:$0xf]
    %v460 = vld [vmem:[#allocation2 + $0x8c] sm:$0xf]
    %v461 = vld [vmem:[#allocation2 + $0x90] sm:$0xf]
    %v462 = vld [vmem:[#allocation2 + $0x94] sm:$0xf]
    %v463 = vld [vmem:[#allocation2 + $0x98] sm:$0xf]
    %v464 = vld [vmem:[#allocation2 + $0x9c] sm:$0xf]
    %v465 = vld [vmem:[#allocation2 + $0xa0] sm:$0xf]
    %v466 = vld [vmem:[#allocation2 + $0xa4] sm:$0xf]
    %v467 = vld [vmem:[#allocation2 + $0xa8] sm:$0xf]
    %v468 = vld [vmem:[#allocation2 + $0xac] sm:$0xf]
    %v469 = vld [vmem:[#allocation2 + $0xb0] sm:$0xf]
    %v470 = vld [vmem:[#allocation2 + $0xb4] sm:$0xf]
    %v471 = vld [vmem:[#allocation2 + $0xb8] sm:$0xf]
    %v472 = vld [vmem:[#allocation2 + $0xbc] sm:$0xf]
    %v473 = vpack.c.bf16 %v442, %v441
    %v474 = vpack.c.bf16 %v444, %v443
    %v475 = vpack.c.bf16 %v446, %v445
    %v476 = vpack.c.bf16 %v448, %v447
    %v477 = vpack.c.bf16 %v450, %v449
    %v478 = vpack.c.bf16 %v452, %v451
    %v479 = vpack.c.bf16 %v454, %v453
    %v480 = vpack.c.bf16 %v456, %v455
    %v497 = vunpack.c.l.b16 %v457
    %v498 = vunpack.c.l.b16 %v458
    %v499 = vunpack.c.l.b16 %v459
    %v500 = vunpack.c.l.b16 %v460
    %v501 = vunpack.c.l.b16 %v461
    %v502 = vunpack.c.l.b16 %v462
    %v503 = vunpack.c.l.b16 %v463
    %v504 = vunpack.c.l.b16 %v464
    %v505 = vunpack.c.l.b16 %v465
    %v506 = vunpack.c.l.b16 %v466
    %v507 = vunpack.c.l.b16 %v467
    %v508 = vunpack.c.l.b16 %v468
    %v509 = vunpack.c.l.b16 %v469
    %v510 = vunpack.c.l.b16 %v470
    %v511 = vunpack.c.l.b16 %v471
    %v512 = vunpack.c.l.b16 %v472
    %v513 = vpack.c.b16 %v498, %v497
    %v514 = vpack.c.b16 %v500, %v499
    %v515 = vpack.c.b16 %v502, %v501
    %v516 = vpack.c.b16 %v504, %v503
    %v517 = vpack.c.b16 %v506, %v505
    %v518 = vpack.c.b16 %v508, %v507
    %v519 = vpack.c.b16 %v510, %v509
    %v520 = vpack.c.b16 %v512, %v511
    %529 = vmatprep.subr.bf16.mxu0 0
    %530 = vmatpush1.bf16.msra.mxu0 %v473
    %531 = vmatprep.subr.bf16.mxu0 0
    %532 = vmatpush1.bf16.msra.mxu0 %v474
    %533 = vmatprep.subr.bf16.mxu0 0
    %534 = vmatpush1.bf16.msra.mxu0 %v475
    %535 = vmatprep.subr.bf16.mxu0 0
    %536 = vmatpush1.bf16.msra.mxu0 %v476
    %537 = vmatprep.subr.bf16.mxu0 0
    %538 = vmatpush1.bf16.msra.mxu0 %v477
    %539 = vmatprep.subr.bf16.mxu0 0
    %540 = vmatpush1.bf16.msra.mxu0 %v478
    %541 = vmatprep.subr.bf16.mxu0 0
    %542 = vmatpush1.bf16.msra.mxu0 %v479
    %543 = vmatprep.subr.bf16.mxu0 0
    %544 = vmatpush1.bf16.msra.mxu0 %v480
    %545 = vmatprep.subr.bf16.mxu0 0
    %546 = vmatpush1.bf16.msra.mxu0 0
    %547 = vmatprep.subr.bf16.mxu0 0
    %548 = vmatpush1.bf16.msra.mxu0 0
    %549 = vmatprep.subr.bf16.mxu0 0
    %550 = vmatpush1.bf16.msra.mxu0 0
    %551 = vmatprep.subr.bf16.mxu0 0
    %552 = vmatpush1.bf16.msra.mxu0 0
    %553 = vmatprep.subr.bf16.mxu0 0
    %554 = vmatpush1.bf16.msra.mxu0 0
    %555 = vmatprep.subr.bf16.mxu0 0
    %556 = vmatpush1.bf16.msra.mxu0 0
    %557 = vmatprep.subr.bf16.mxu0 0
    %558 = vmatpush1.bf16.msra.mxu0 0
    %559 = vmatprep.subr.bf16.mxu0 0
    %560 = vmatpush1.bf16.msra.mxu0 0
    %561 = vmatprep.mubr.bf16.mxu0 0
    %562 = vmatmul.mubr.bf16.gmra.mrb[0].mxu0 %v513
    %v563 = vpop.f32.mrb[0].mxu0
    %v564 = vadd.f32 0.0, %v563
    %v565 = vpop.f32.mrb[0].mxu0
    %v566 = vpop.f32.mrb[0].mxu0
    %v567 = vadd.f32 0.0, %v566
    %v568 = vpop.f32.mrb[0].mxu0
    %569 = vmatprep.mubr.bf16.mxu0 0
    %570 = vmatmul.mubr.bf16.gmra.mrb[0].mxu0 %v514
    %v571 = vpop.f32.mrb[0].mxu0
    %v572 = vadd.f32 0.0, %v571
    %v573 = vpop.f32.mrb[0].mxu0
    %v574 = vpop.f32.mrb[0].mxu0
    %v575 = vadd.f32 0.0, %v574
    %v576 = vpop.f32.mrb[0].mxu0
    %577 = vmatprep.mubr.bf16.mxu0 0
    %578 = vmatmul.mubr.bf16.gmra.mrb[0].mxu0 %v515
    %v579 = vpop.f32.mrb[0].mxu0
    %v580 = vadd.f32 0.0, %v579
    %v581 = vpop.f32.mrb[0].mxu0
    %v582 = vpop.f32.mrb[0].mxu0
    %v583 = vadd.f32 0.0, %v582
    %v584 = vpop.f32.mrb[0].mxu0
    %585 = vmatprep.mubr.bf16.mxu0 0
    %586 = vmatmul.mubr.bf16.gmra.mrb[0].mxu0 %v516
    %v587 = vpop.f32.mrb[0].mxu0
    %v588 = vadd.f32 0.0, %v587
    %v589 = vpop.f32.mrb[0].mxu0
    %v590 = vpop.f32.mrb[0].mxu0
    %v591 = vadd.f32 0.0, %v590
    %v592 = vpop.f32.mrb[0].mxu0
    %593 = vmatprep.mubr.bf16.mxu0 0
    %594 = vmatmul.mubr.bf16.gmra.mrb[0].mxu0 %v517
    %v595 = vpop.f32.mrb[0].mxu0
    %v596 = vadd.f32 0.0, %v595
    %v597 = vpop.f32.mrb[0].mxu0
    %v598 = vpop.f32.mrb[0].mxu0
    %v599 = vadd.f32 0.0, %v598
    %v600 = vpop.f32.mrb[0].mxu0
    %601 = vmatprep.mubr.bf16.mxu0 0
    %602 = vmatmul.mubr.bf16.gmra.mrb[0].mxu0 %v518
    %v603 = vpop.f32.mrb[0].mxu0
    %v604 = vadd.f32 0.0, %v603
    %v605 = vpop.f32.mrb[0].mxu0
    %v606 = vpop.f32.mrb[0].mxu0
    %v607 = vadd.f32 0.0, %v606
    %v608 = vpop.f32.mrb[0].mxu0
    %609 = vmatprep.mubr.bf16.mxu0 0
    %610 = vmatmul.mubr.bf16.gmra.mrb[0].mxu0 %v519
    %v611 = vpop.f32.mrb[0].mxu0
    %v612 = vadd.f32 0.0, %v611
    %v613 = vpop.f32.mrb[0].mxu0
    %v614 = vpop.f32.mrb[0].mxu0
    %v615 = vadd.f32 0.0, %v614
    %v616 = vpop.f32.mrb[0].mxu0
    %617 = vmatprep.mubr.bf16.mxu0 0
    %618 = vmatmul.mubr.bf16.gmra.mrb[0].mxu0 %v520
    %v619 = vpop.f32.mrb[0].mxu0
    %v620 = vadd.f32 0.0, %v619
    %v621 = vpop.f32.mrb[0].mxu0
    %v622 = vpop.f32.mrb[0].mxu0
    %v623 = vadd.f32 0.0, %v622
    %v624 = vpop.f32.mrb[0].mxu0
    %625 = vdwg.mxu0
    %vm626 = vcmp.ge.f32.partialorder %v564, 0.0
    %vm627 = vcmp.ge.f32.partialorder %v567, 0.0
    %vm628 = vcmp.ge.f32.partialorder %v572, 0.0
    %vm629 = vcmp.ge.f32.partialorder %v575, 0.0
    %vm630 = vcmp.ge.f32.partialorder %v580, 0.0
    %vm631 = vcmp.ge.f32.partialorder %v583, 0.0
    %vm632 = vcmp.ge.f32.partialorder %v588, 0.0
    %vm633 = vcmp.ge.f32.partialorder %v591, 0.0
    %vm634 = vcmp.ge.f32.partialorder %v596, 0.0
    %vm635 = vcmp.ge.f32.partialorder %v599, 0.0
    %vm636 = vcmp.ge.f32.partialorder %v604, 0.0
    %vm637 = vcmp.ge.f32.partialorder %v607, 0.0
    %vm638 = vcmp.ge.f32.partialorder %v612, 0.0
    %vm639 = vcmp.ge.f32.partialorder %v615, 0.0
    %vm640 = vcmp.ge.f32.partialorder %v620, 0.0
    %vm641 = vcmp.ge.f32.partialorder %v623, 0.0
    %v642 = vmul.f32 %v564, 0.01
    %v643 = vmul.f32 %v567, 0.01
    %v644 = vmul.f32 %v572, 0.01
    %v645 = vmul.f32 %v575, 0.01
    %v646 = vmul.f32 %v580, 0.01
    %v647 = vmul.f32 %v583, 0.01
    %v648 = vmul.f32 %v588, 0.01
    %v649 = vmul.f32 %v591, 0.01
    %v650 = vmul.f32 %v596, 0.01
    %v651 = vmul.f32 %v599, 0.01
    %v652 = vmul.f32 %v604, 0.01
    %v653 = vmul.f32 %v607, 0.01
    %v654 = vmul.f32 %v612, 0.01
    %v655 = vmul.f32 %v615, 0.01
    %v656 = vmul.f32 %v620, 0.01
    %v657 = vmul.f32 %v623, 0.01
    %v658 = vsel %vm626, %v564, %v642
    %v659 = vsel %vm627, %v567, %v643
    %v660 = vsel %vm628, %v572, %v644
    %v661 = vsel %vm629, %v575, %v645
    %v662 = vsel %vm630, %v580, %v646
    %v663 = vsel %vm631, %v583, %v647
    %v664 = vsel %vm632, %v588, %v648
    %v665 = vsel %vm633, %v591, %v649
    %v666 = vsel %vm634, %v596, %v650
    %v667 = vsel %vm635, %v599, %v651
    %v668 = vsel %vm636, %v604, %v652
    %v669 = vsel %vm637, %v607, %v653
    %v670 = vsel %vm638, %v612, %v654
    %v671 = vsel %vm639, %v615, %v655
    %v672 = vsel %vm640, %v620, %v656
    %v673 = vsel %vm641, %v623, %v657
    %v674 = vld [vmem:[#allocation2 + $0xc0] sm:$0xf]
    %v675 = vld [vmem:[#allocation2 + $0xc4] sm:$0xf]
    %v676 = vld [vmem:[#allocation2 + $0xc8] sm:$0xf]
    %v677 = vld [vmem:[#allocation2 + $0xcc] sm:$0xf]
    %v678 = vld [vmem:[#allocation2 + $0xd0] sm:$0xf]
    %v679 = vld [vmem:[#allocation2 + $0xd4] sm:$0xf]
    %v680 = vld [vmem:[#allocation2 + $0xd8] sm:$0xf]
    %v681 = vld [vmem:[#allocation2 + $0xdc] sm:$0xf]
    %v682 = vld [vmem:[#allocation2 + $0xe0] sm:$0xf]
    %v683 = vld [vmem:[#allocation2 + $0xe4] sm:$0xf]
    %v684 = vld [vmem:[#allocation2 + $0xe8] sm:$0xf]
    %v685 = vld [vmem:[#allocation2 + $0xec] sm:$0xf]
    %v686 = vld [vmem:[#allocation2 + $0xf0] sm:$0xf]
    %v687 = vld [vmem:[#allocation2 + $0xf4] sm:$0xf]
    %v688 = vld [vmem:[#allocation2 + $0xf8] sm:$0xf]
    %v689 = vld [vmem:[#allocation2 + $0xfc] sm:$0xf]
    %v690 = vpack.c.bf16 %v659, %v658
    %v691 = vpack.c.bf16 %v661, %v660
    %v692 = vpack.c.bf16 %v663, %v662
    %v693 = vpack.c.bf16 %v665, %v664
    %v694 = vpack.c.bf16 %v667, %v666
    %v695 = vpack.c.bf16 %v669, %v668
    %v696 = vpack.c.bf16 %v671, %v670
    %v697 = vpack.c.bf16 %v673, %v672
    %v714 = vunpack.c.l.b16 %v674
    %v715 = vunpack.c.l.b16 %v675
    %v716 = vunpack.c.l.b16 %v676
    %v717 = vunpack.c.l.b16 %v677
    %v718 = vunpack.c.l.b16 %v678
    %v719 = vunpack.c.l.b16 %v679
    %v720 = vunpack.c.l.b16 %v680
    %v721 = vunpack.c.l.b16 %v681
    %v722 = vunpack.c.l.b16 %v682
    %v723 = vunpack.c.l.b16 %v683
    %v724 = vunpack.c.l.b16 %v684
    %v725 = vunpack.c.l.b16 %v685
    %v726 = vunpack.c.l.b16 %v686
    %v727 = vunpack.c.l.b16 %v687
    %v728 = vunpack.c.l.b16 %v688
    %v729 = vunpack.c.l.b16 %v689
    %v730 = vpack.c.b16 %v715, %v714
    %v731 = vpack.c.b16 %v717, %v716
    %v732 = vpack.c.b16 %v719, %v718
    %v733 = vpack.c.b16 %v721, %v720
    %v734 = vpack.c.b16 %v723, %v722
    %v735 = vpack.c.b16 %v725, %v724
    %v736 = vpack.c.b16 %v727, %v726
    %v737 = vpack.c.b16 %v729, %v728
    %746 = vmatprep.subr.bf16.mxu0 0
    %747 = vmatpush1.bf16.msra.mxu0 %v690
    %748 = vmatprep.subr.bf16.mxu0 0
    %749 = vmatpush1.bf16.msra.mxu0 %v691
    %750 = vmatprep.subr.bf16.mxu0 0
    %751 = vmatpush1.bf16.msra.mxu0 %v692
    %752 = vmatprep.subr.bf16.mxu0 0
    %753 = vmatpush1.bf16.msra.mxu0 %v693
    %754 = vmatprep.subr.bf16.mxu0 0
    %755 = vmatpush1.bf16.msra.mxu0 %v694
    %756 = vmatprep.subr.bf16.mxu0 0
    %757 = vmatpush1.bf16.msra.mxu0 %v695
    %758 = vmatprep.subr.bf16.mxu0 0
    %759 = vmatpush1.bf16.msra.mxu0 %v696
    %760 = vmatprep.subr.bf16.mxu0 0
    %761 = vmatpush1.bf16.msra.mxu0 %v697
    %762 = vmatprep.subr.bf16.mxu0 0
    %763 = vmatpush1.bf16.msra.mxu0 0
    %764 = vmatprep.subr.bf16.mxu0 0
    %765 = vmatpush1.bf16.msra.mxu0 0
    %766 = vmatprep.subr.bf16.mxu0 0
    %767 = vmatpush1.bf16.msra.mxu0 0
    %768 = vmatprep.subr.bf16.mxu0 0
    %769 = vmatpush1.bf16.msra.mxu0 0
    %770 = vmatprep.subr.bf16.mxu0 0
    %771 = vmatpush1.bf16.msra.mxu0 0
    %772 = vmatprep.subr.bf16.mxu0 0
    %773 = vmatpush1.bf16.msra.mxu0 0
    %774 = vmatprep.subr.bf16.mxu0 0
    %775 = vmatpush1.bf16.msra.mxu0 0
    %776 = vmatprep.subr.bf16.mxu0 0
    %777 = vmatpush1.bf16.msra.mxu0 0
    %778 = vmatprep.mubr.bf16.mxu0 0
    %779 = vmatmul.mubr.bf16.gmra.mrb[0].mxu0 %v730
    %v780 = vpop.f32.mrb[0].mxu0
    %v781 = vadd.f32 0.0, %v780
    %v782 = vpop.f32.mrb[0].mxu0
    %v783 = vpop.f32.mrb[0].mxu0
    %v784 = vpop.f32.mrb[0].mxu0
    %785 = vmatprep.mubr.bf16.mxu0 0
    %786 = vmatmul.mubr.bf16.gmra.mrb[0].mxu0 %v731
    %v787 = vpop.f32.mrb[0].mxu0
    %v788 = vpop.f32.mrb[0].mxu0
    %v789 = vpop.f32.mrb[0].mxu0
    %v790 = vpop.f32.mrb[0].mxu0
    %791 = vmatprep.mubr.bf16.mxu0 0
    %792 = vmatmul.mubr.bf16.gmra.mrb[0].mxu0 %v732
    %v793 = vpop.f32.mrb[0].mxu0
    %v794 = vpop.f32.mrb[0].mxu0
    %v795 = vpop.f32.mrb[0].mxu0
    %v796 = vpop.f32.mrb[0].mxu0
    %797 = vmatprep.mubr.bf16.mxu0 0
    %798 = vmatmul.mubr.bf16.gmra.mrb[0].mxu0 %v733
    %v799 = vpop.f32.mrb[0].mxu0
    %v800 = vpop.f32.mrb[0].mxu0
    %v801 = vpop.f32.mrb[0].mxu0
    %v802 = vpop.f32.mrb[0].mxu0
    %803 = vmatprep.mubr.bf16.mxu0 0
    %804 = vmatmul.mubr.bf16.gmra.mrb[0].mxu0 %v734
    %v805 = vpop.f32.mrb[0].mxu0
    %v806 = vpop.f32.mrb[0].mxu0
    %v807 = vpop.f32.mrb[0].mxu0
    %v808 = vpop.f32.mrb[0].mxu0
    %809 = vmatprep.mubr.bf16.mxu0 0
    %810 = vmatmul.mubr.bf16.gmra.mrb[0].mxu0 %v735
    %v811 = vpop.f32.mrb[0].mxu0
    %v812 = vpop.f32.mrb[0].mxu0
    %v813 = vpop.f32.mrb[0].mxu0
    %v814 = vpop.f32.mrb[0].mxu0
    %815 = vmatprep.mubr.bf16.mxu0 0
    %816 = vmatmul.mubr.bf16.gmra.mrb[0].mxu0 %v736
    %v817 = vpop.f32.mrb[0].mxu0
    %v818 = vpop.f32.mrb[0].mxu0
    %v819 = vpop.f32.mrb[0].mxu0
    %v820 = vpop.f32.mrb[0].mxu0
    %821 = vmatprep.mubr.bf16.mxu0 0
    %822 = vmatmul.mubr.bf16.gmra.mrb[0].mxu0 %v737
    %v823 = vpop.f32.mrb[0].mxu0
    %v824 = vpop.f32.mrb[0].mxu0
    %v825 = vpop.f32.mrb[0].mxu0
    %v826 = vpop.f32.mrb[0].mxu0
    %827 = vdwg.mxu0
    %vm828 = vcmp.ge.f32.partialorder %v781, 0.0
    %v829 = vmul.f32 %v781, 0.01
    %v830 = vsel %vm828, %v781, %v829
    %v832 = vrot.slane %v830, 1
    %v834 = vsub.f32 %v830, %v832
    %v835 = vmul.f32 %v834, 1.442695
    %v836 = vpow.pop %v835
    %v837 = vadd.f32 %v836, 1.0
    %v838 = vrcp.pop %v837
    %v839 = vlaneseq
    %v840 = vshrl.u32 %v839, 7
    %vm841 = vcmp.eq.s32.totalorder %v840, 0
    %v842 = vsub.f32 1.0, %v838
    %v843 = vlaneseq
    %v844 = vshrl.u32 %v843, 7
    %v845 = vsub.s32 0, %v844
    %v846 = vrot.slane %v842, %v845
    %v847 = vlaneseq
    %v848 = vshrl.u32 %v847, 7
    %v849 = vsub.s32 0, %v848
    %v850 = vrot.slane %v838, %v849
    %v851 = vsel %vm841, %v846, %v850
    %852 = vst [vmem:[%s2] sm:$0x3] %v851
    // Predicated region
    $region14: #{churn_prediction_forward.1} parent=1 // pred_check
      _
    $region15: #{churn_prediction_forward.1} parent=1 // pred_check_branch
      %854 = sbr.rel (0) target = $region17
    $region16: #{churn_prediction_forward.1} parent=1 // pred_region
      _
    $region17: #{churn_prediction_forward.1} parent=1 // pred_fallthru
      _
    // Predicated region
    $region18: #{churn_prediction_forward.1} parent=1 // pred_check
      _
    $region19: #{churn_prediction_forward.1} parent=1 // pred_check_branch
      %856 = sbr.rel (0) target = $region21
    $region20: #{churn_prediction_forward.1} parent=1 // pred_region
      _
    $region21: #{churn_prediction_forward.1} parent=1 // pred_fallthru
      _
    %857 = vsyncpa [#allocation3], 1

</llo_original>
